<compile_context>
chip_gen: v7x
topology: tpu7x:2x2x1
jax: 0.10.0
libtpu: 0.0.40
codegen_flags: <defaults>
</compile_context>

<pallas_src>
import math

import jax
import jax.numpy as jnp
from jax.experimental import pallas as pl
from jax.experimental.pallas import tpu as pltpu

_LANES = 128
_SUBLANES = 8
_MAX_FEAT_TILE = 32 * 1024            # 128 KiB of f32 per row-chunk before we tile D
_VMEM_BUDGET = 12 * 1024 * 1024       # stay under v5e's 16 MiB default scoped VMEM


def _round_up(n, m):
    return (n + m - 1) // m * m


def _choose_tiles(B, D, block_rows=None, block_features=None):
    """Pick (batch_tile, feature_tile, n_feature_tiles, padded_D)."""
    # Feature (reduction) tile: whole row in the common case, 128-multiple chunks if huge.
    if block_features is not None:
        td = int(block_features)
    elif D <= _MAX_FEAT_TILE:
        td = D
    else:
        n = math.ceil(D / _MAX_FEAT_TILE)
        td = _round_up(math.ceil(D / n), _LANES)
    assert td == D or td % _LANES == 0, "feature tile must be full-D or a multiple of 128"
    n_k = math.ceil(D / td)
    d_pad = n_k * td

    # Batch tile: biggest tile whose double-buffered blocks fit the VMEM budget.
    if block_rows is not None:
        tb = int(block_rows)
        assert tb == B or tb % _SUBLANES == 0, "batch tile must be full-B or a multiple of 8"
    else:
        td_lanes = _round_up(td, _LANES)
        # per-row VMEM bytes: x (2 bufs, lane-padded) + (tb,1) out (2 bufs) + f32 accumulator.
        per_row = 4 * (2 * td_lanes + 3 * _LANES)
        tb = max(_SUBLANES,
                 min(_VMEM_BUDGET // per_row, 8192) // _SUBLANES * _SUBLANES)
        if B <= tb:
            tb = B                     # single batch tile; full-dim blocks are always legal
    return tb, td, n_k, d_pad


def _bias_detector_kernel(x_ref, w_ref, b_ref, o_ref, acc_ref):
    """One (tb, td) tile of x against the matching (1, td) slice of the weight row.

    grid = (batch tiles, feature tiles); the feature axis is a reduction carried in the
    f32 VMEM accumulator (the out_specs index_map ignores k, so o_ref persists over k).
    """
    k = pl.program_id(1)

    @pl.when(k == 0)
    def _init():
        acc_ref[...] = jnp.zeros_like(acc_ref)

    # VPU multiply + lane reduction; upcast to f32 so bf16 inputs accumulate exactly.
    x = x_ref[...].astype(jnp.float32)                       # (tb, td)
    w = w_ref[...].astype(jnp.float32)                       # (1, td) -> broadcast over rows
    acc_ref[...] += jnp.sum(x * w, axis=-1, keepdims=True)   # (tb, 1)

    @pl.when(k == pl.num_programs(1) - 1)
    def _finish():
        z = acc_ref[...] + b_ref[0]                          # bias scalar read from SMEM
        o_ref[...] = 1.0 / (1.0 + jnp.exp(-z))               # sigmoid (EUP exp + divide)


def bias_detector(x, weight, bias, *, block_rows=None, block_features=None):
    """sigmoid(x @ weight.T + bias).  x: (B, D), weight: (1, D), bias: (1,) -> (B, 1) f32."""
    B, D = x.shape
    assert weight.shape == (1, D), f"weight must be (1, {D}), got {weight.shape}"
    assert bias.shape == (1,), f"bias must be (1,), got {bias.shape}"

    tb, td, n_k, d_pad = _choose_tiles(B, D, block_rows, block_features)

    if d_pad != D:                      # zero-pad features so the reduction grid divides evenly
        x = jnp.pad(x, ((0, 0), (0, d_pad - D)))
        weight = jnp.pad(weight, ((0, 0), (0, d_pad - D)))

    bias = bias.astype(jnp.float32)
    grid = (pl.cdiv(B, tb), n_k)        # reduction axis last; ragged batch edge is masked

    return pl.pallas_call(
        _bias_detector_kernel,
        out_shape=jax.ShapeDtypeStruct((B, 1), jnp.float32),
        grid=grid,
        in_specs=[
            pl.BlockSpec((tb, td), lambda i, k: (i, k)),           # x tile (pipelined)
            pl.BlockSpec((1, td), lambda i, k: (0, k)),            # weight row: VMEM-resident
            pl.BlockSpec(memory_space=pltpu.MemorySpace.SMEM),     # bias scalar in SMEM
        ],
        out_specs=pl.BlockSpec((tb, 1), lambda i, k: (i, 0)),
        scratch_shapes=[pltpu.VMEM((tb, 1), jnp.float32)],
        compiler_params=pltpu.CompilerParams(
            dimension_semantics=("parallel", "arbitrary")),        # batch across v7x's 2 TCs
    )(x, weight, bias)


def init_params(key, input_dim):
    """Deterministic init mimicking nn.Linear's default (uniform +-1/sqrt(fan_in))."""
    kw, kb = jax.random.split(key)
    bound = 1.0 / math.sqrt(input_dim)
    weight = jax.random.uniform(kw, (1, input_dim), jnp.float32, -bound, bound)
    bias = jax.random.uniform(kb, (1,), jnp.float32, -bound, bound)
    return weight, bias


if __name__ == "__main__":
    key = jax.random.PRNGKey(0)
    k_x, k_p = jax.random.split(key)

    def reference(x, w, b):
        return jax.nn.sigmoid(x.astype(jnp.float32) @ w.astype(jnp.float32).T + b)

    # 1) tiny single-tile case (the module's typical small use)
    B, D = 8, 32
    x = jax.random.normal(k_x, (B, D), jnp.float32)
    weight, bias = init_params(k_p, D)
    y = jax.block_until_ready(bias_detector(x, weight, bias))
    assert y.shape == (B, 1)
    assert jnp.allclose(y, reference(x, weight, bias), atol=1e-5)

    # 2) multi-tile batch grid with a ragged last tile (exercises pipelining + store masking)
    B2 = 200
    x2 = jax.random.normal(k_x, (B2, D), jnp.float32)
    y2 = jax.block_until_ready(bias_detector(x2, weight, bias, block_rows=64))
    assert jnp.allclose(y2, reference(x2, weight, bias), atol=1e-5)

    # 3) feature-tiled reduction grid (exercises the accumulator / pl.when path)
    D3 = 384
    x3 = jax.random.normal(k_x, (64, D3), jnp.float32)
    w3, b3 = init_params(k_p, D3)
    y3 = jax.block_until_ready(bias_detector(x3, w3, b3, block_features=128))
    assert jnp.allclose(y3, reference(x3, w3, b3), atol=1e-5)

    # 4) bf16 activations/weights, f32 accumulation inside the kernel
    xb, wb = x2.astype(jnp.bfloat16), weight.astype(jnp.bfloat16)
    y4 = jax.block_until_ready(bias_detector(xb, wb, bias))
    assert jnp.allclose(y4, reference(xb, wb, bias), atol=1e-5)

    print("KERNEL_OK")
</pallas_src>

<mosaic_0001>
module attributes {stable_mosaic.version = 11 : i64} {
  func.func @_bias_detector_kernel(%arg0: i32, %arg1: i32, %arg2: memref<8x32xf32, #tpu.memory_space<vmem>>, %arg3: memref<1x32xf32, #tpu.memory_space<vmem>>, %arg4: memref<1xf32, #tpu.memory_space<smem>>, %arg5: memref<8x1xf32, #tpu.memory_space<vmem>>, %arg6: memref<8x1xf32, #tpu.memory_space<vmem>>) attributes {dimension_semantics = [#tpu.dimension_semantics<parallel>, #tpu.dimension_semantics<arbitrary>], iteration_bounds = array<i64: 1, 1>, scalar_prefetch = 0 : i64, scratch_operands = 1 : i64, tpu.core_type = #tpu.core_type<tc>, window_params = [{transform_indices = @transform_0, window_bounds = array<i64: 8, 32>}, {transform_indices = @transform_1, window_bounds = array<i64: 1, 32>}, {transform_indices = @transform_2, window_bounds = array<i64: 1>}, {transform_indices = @transform_3, window_bounds = array<i64: 8, 1>}]} {
    %c0_i32 = arith.constant 0 : i32
    %0 = arith.cmpi eq, %arg1, %c0_i32 : i32
    %1 = arith.extui %0 : i1 to i32
    %c0_i32_0 = arith.constant 0 : i32
    %2 = arith.cmpi ne, %1, %c0_i32_0 : i32
    scf.if %2 {
      %cst_10 = arith.constant 0.000000e+00 : f32
      %15 = vector.broadcast %cst_10 : f32 to vector<8x1xf32>
      %c0_11 = arith.constant 0 : index
      %c0_12 = arith.constant 0 : index
      %16 = vector.load %arg6[%c0_11, %c0_12] : memref<8x1xf32, #tpu.memory_space<vmem>>, vector<8x1xf32>
      tpu.vector_store %arg6[%c0_11, %c0_12], %15 {strides = array<i32>} : memref<8x1xf32, #tpu.memory_space<vmem>>, vector<8x1xf32>,
    } else {
    }
    %c0 = arith.constant 0 : index
    %c0_1 = arith.constant 0 : index
    %3 = vector.load %arg2[%c0, %c0_1] : memref<8x32xf32, #tpu.memory_space<vmem>>, vector<8x32xf32>
    %c0_2 = arith.constant 0 : index
    %c0_3 = arith.constant 0 : index
    %4 = vector.load %arg3[%c0_2, %c0_3] : memref<1x32xf32, #tpu.memory_space<vmem>>, vector<1x32xf32>
    %c0_4 = arith.constant 0 : index
    %c0_5 = arith.constant 0 : index
    %5 = vector.load %arg6[%c0_4, %c0_5] : memref<8x1xf32, #tpu.memory_space<vmem>>, vector<8x1xf32>
    %6 = vector.broadcast %4 : vector<1x32xf32> to vector<8x32xf32>
    %7 = arith.mulf %3, %6 : vector<8x32xf32>
    %cst = arith.constant dense<0.000000e+00> : vector<8xf32>
    %8 = vector.multi_reduction <add>, %7, %cst [1] : vector<8x32xf32> to vector<8xf32>
    %9 = vector.shape_cast %8 : vector<8xf32> to vector<8x1xf32>
    %10 = arith.addf %5, %9 : vector<8x1xf32>
    %c0_6 = arith.constant 0 : index
    %c0_7 = arith.constant 0 : index
    %11 = vector.load %arg6[%c0_6, %c0_7] : memref<8x1xf32, #tpu.memory_space<vmem>>, vector<8x1xf32>
    tpu.vector_store %arg6[%c0_6, %c0_7], %10 {strides = array<i32>} : memref<8x1xf32, #tpu.memory_space<vmem>>, vector<8x1xf32>,
    %c0_i32_8 = arith.constant 0 : i32
    %12 = arith.cmpi eq, %arg1, %c0_i32_8 : i32
    %13 = arith.extui %12 : i1 to i32
    %c0_i32_9 = arith.constant 0 : i32
    %14 = arith.cmpi ne, %13, %c0_i32_9 : i32
    scf.if %14 {
      %c0_10 = arith.constant 0 : index
      %c0_11 = arith.constant 0 : index
      %15 = vector.load %arg6[%c0_10, %c0_11] : memref<8x1xf32, #tpu.memory_space<vmem>>, vector<8x1xf32>
      %c0_12 = arith.constant 0 : index
      %16 = memref.load %arg4[%c0_12] : memref<1xf32, #tpu.memory_space<smem>>
      %17 = vector.broadcast %16 : f32 to vector<8x1xf32>
      %18 = arith.addf %15, %17 : vector<8x1xf32>
      %cst_13 = arith.constant 0.000000e+00 : f32
      %19 = vector.broadcast %cst_13 : f32 to vector<8x1xf32>
      %20 = arith.subf %19, %18 : vector<8x1xf32>
      %21 = math.exp %20 : vector<8x1xf32>
      %cst_14 = arith.constant 1.000000e+00 : f32
      %22 = vector.broadcast %cst_14 : f32 to vector<8x1xf32>
      %23 = arith.addf %22, %21 : vector<8x1xf32>
      %cst_15 = arith.constant 1.000000e+00 : f32
      %24 = vector.broadcast %cst_15 : f32 to vector<8x1xf32>
      %25 = arith.divf %24, %23 : vector<8x1xf32>
      %c0_16 = arith.constant 0 : index
      %c0_17 = arith.constant 0 : index
      %26 = vector.load %arg5[%c0_16, %c0_17] : memref<8x1xf32, #tpu.memory_space<vmem>>, vector<8x1xf32>
      tpu.vector_store %arg5[%c0_16, %c0_17], %25 {strides = array<i32>} : memref<8x1xf32, #tpu.memory_space<vmem>>, vector<8x1xf32>,
    } else {
    }
    return
  }
  func.func @transform_0(%arg0: i32, %arg1: i32) -> (i32, i32) {
    %c0_i32 = arith.constant 0 : i32
    return %arg0, %arg1 : i32, i32
  }
  func.func @transform_1(%arg0: i32, %arg1: i32) -> (i32, i32) {
    %c0_i32 = arith.constant 0 : i32
    %c0_i32_0 = arith.constant 0 : i32
    return %c0_i32, %arg1 : i32, i32
  }
  func.func @transform_2(%arg0: i32, %arg1: i32) -> i32 {
    %c0_i32 = arith.constant 0 : i32
    %c0_i32_0 = arith.constant 0 : i32
    return %c0_i32 : i32
  }
  func.func @transform_3(%arg0: i32, %arg1: i32) -> (i32, i32) {
    %c0_i32 = arith.constant 0 : i32
    %c0_i32_0 = arith.constant 0 : i32
    return %arg0, %c0_i32 : i32, i32
  }
}

</mosaic_0001>

<llo_original>
// kernel: tpu_custom_call.1
$region0: #{tpu_custom_call.1}
  #allocation0 [shape = 'u32[]', space=smem, size = 0x4, offset = 0x4, fixed_abs, tag = 'smem constant byte address 0x4 - core index']
  #allocation1 [shape = 'u32[144,128]{1,0:T(1,128)}', space=vmem, size = 0x12000, scoped, tag = 'internal scratch']
  #allocation2 [shape = 'f32[8,1]{1,0:T(8,128)}', space=vmem, size = 0x1000, scoped, tag = 'scratch operand']
  #allocation3 [shape = 'f32[1]{0:T(128)S(6)}', space=smem, size = 0x200, scoped, tag = 'scoped memory for tpu_custom_call.1']
  %s0 = inlined_call_operand.hbm [shape: f32[8,32], index: 0, kind: input, shape index: {}]
  %s1 = inlined_call_operand.vmem [shape: f32[1,32], index: 1, kind: input, shape index: {}]
  %s2 = inlined_call_operand.<no memory space> [shape: f32[1], index: 2, kind: input, shape index: {}]
  %s3 = inlined_call_operand.vmem [shape: f32[8,1], index: 3, kind: output, shape index: {}]
  %s4 = sld [smem:[#allocation0]]
  $region34: #{tpu_custom_call.1} parent=0
    _
  %s6 = ssub.s32 1, %s4
  %s7 = scalar_select 0, %s6, %s4
  %8 = sst [smem:[#allocation3]] %s2
  $region1: #{tpu_custom_call.1} parent=0
    #allocation4 [shape = 'u8[4096]{0}', space=vmem, size = 0x1000, scoped, tag = 'input window, operand 0, single buffered']
    #allocation5 [shape = 's32[1]{0}', space=sflag, size = 0x4, scoped, tag = 'scoped memory for tpu_custom_call.1']
    %9 = vsyncpa [#allocation5], 0
    // Predicated region
    $region2: #{tpu_custom_call.1} parent=1 // pred_check
      _
    $region3: #{tpu_custom_call.1} parent=1 // pred_check_branch
      %11 = sbr.rel (0) target = $region5
    $region4: #{tpu_custom_call.1} parent=1 // pred_region
      %s13 = ssub.s32 128, 128
      %14 = vsyncadd [#allocation5], %s13
      %s16 = sshll.u32 [#allocation4], 4
      %s17 = int_to_ptr.vmem [resolvable:$true] %s16
      %19 = dma.hbm_to_vmem [thread:$0]  %s0, 128, %s17, [#allocation5]
    $region5: #{tpu_custom_call.1} parent=1 // pred_fallthru
      _
    // Predicated region
    $region6: #{tpu_custom_call.1} parent=1 // pred_check
      _
    $region7: #{tpu_custom_call.1} parent=1 // pred_check_branch
      %21 = sbr.rel (0) target = $region9
    $region8: #{tpu_custom_call.1} parent=1 // pred_region
      _
    $region9: #{tpu_custom_call.1} parent=1 // pred_fallthru
      _
    // Predicated region
    $region10: #{tpu_custom_call.1} parent=1 // pred_check
      _
    $region11: #{tpu_custom_call.1} parent=1 // pred_check_branch
      %23 = sbr.rel (0) target = $region13
    $region12: #{tpu_custom_call.1} parent=1 // pred_region
      _
    $region13: #{tpu_custom_call.1} parent=1 // pred_fallthru
      _
    // Predicated region
    $region14: #{tpu_custom_call.1} parent=1 // pred_check
      _
    $region15: #{tpu_custom_call.1} parent=1 // pred_check_branch
      %25 = sbr.rel (0) target = $region17
    $region16: #{tpu_custom_call.1} parent=1 // pred_region
      %26 = dma.done [#allocation5], 128
    $region17: #{tpu_custom_call.1} parent=1 // pred_fallthru
      _
    %p27 = scmp.eq.s32.totalorder 0, 0
    // Predicated region
    $region18: #{tpu_custom_call.1} parent=1 // pred_check
      %p28 = pneg %p27
    $region19: #{tpu_custom_call.1} parent=1 // pred_check_branch
      %30 = sbr.rel (%p28) target = $region21
    $region20: #{tpu_custom_call.1} parent=1 // pred_region
      %vm31 = vcmask 7168
      %32 = vst.msk [vmem:[#allocation2] sm:$0xff] %vm31, 0.0
    $region21: #{tpu_custom_call.1} parent=1 // pred_fallthru
      _
    %v33 = vld [vmem:[#allocation4] sm:$0xff]
    %v34 = vld [vmem:[%s1] sm:$0x1]
    %v35 = vld [vmem:[#allocation2] sm:$0xff]
    %v37 = vlaneseq
    %v38 = vshrl.u32 %v37, 7
    %v39 = vsub.s32 0, %v38
    %v40 = vrot.slane %v34, %v39
    %v42 = vmul.f32 %v33, %v40
    %vm43 = vcmask 261120
    %v44 = vsel %vm43, %v42, 0.0
    %45 = vadd.xlane.f32.xlu0 %v44
    %v46 = vpop.xlane.xlu0 %45
    %v47 = vadd.f32 %v35, %v46
    %vm48 = vcmask 7168
    %49 = vst.msk [vmem:[#allocation2] sm:$0xff] %vm48, %v47
    // Predicated region
    $region22: #{tpu_custom_call.1} parent=1 // pred_check
      %p50 = pneg %p27
    $region23: #{tpu_custom_call.1} parent=1 // pred_check_branch
      %52 = sbr.rel (%p50) target = $region25
    $region24: #{tpu_custom_call.1} parent=1 // pred_region
      %v53 = vld [vmem:[#allocation2] sm:$0xff]
      %s54 = sld [smem:[#allocation3]]
      %v55 = vstv %s54
      %v56 = vadd.f32 %v53, %v55
      %v57 = vsub.f32 0.0, %v56
      %v58 = vmul.f32 %v57, 1.442695
      %v59 = vpow.pop %v58
      %v60 = vadd.f32 %v59, 1.0
      %v61 = vrcp.pop %v60
      %v62 = vmul.f32 1.0, %v61
      %63 = vst.msk [vmem:[%s3] sm:$0xff] %vm48, %v62
    $region25: #{tpu_custom_call.1} parent=1 // pred_fallthru
      _
    // Predicated region
    $region26: #{tpu_custom_call.1} parent=1 // pred_check
      _
    $region27: #{tpu_custom_call.1} parent=1 // pred_check_branch
      %65 = sbr.rel (0) target = $region29
    $region28: #{tpu_custom_call.1} parent=1 // pred_region
      _
    $region29: #{tpu_custom_call.1} parent=1 // pred_fallthru
      _
    // Predicated region
    $region30: #{tpu_custom_call.1} parent=1 // pred_check
      _
    $region31: #{tpu_custom_call.1} parent=1 // pred_check_branch
      %67 = sbr.rel (0) target = $region33
    $region32: #{tpu_custom_call.1} parent=1 // pred_region
      _
    $region33: #{tpu_custom_call.1} parent=1 // pred_fallthru
      _
    %68 = vsyncpa [#allocation5], 1

</llo_original>
